<compile_context>
chip_gen: v7x
topology: tpu7x:2x2x1
jax: 0.10.0
libtpu: 0.0.40
codegen_flags: <defaults>
</compile_context>

<pallas_src>
import functools
import math

import jax
import jax.numpy as jnp
from jax import lax
from jax.experimental import pallas as pl
from jax.experimental.pallas import tpu as pltpu


# ----------------------------------------------------------------------------
# AffineClassic: parameters -> affine matrix (plain JAX glue, see TODO above).
# ----------------------------------------------------------------------------
def _rotation_matrix(angles, dim):
    angles = jnp.asarray(angles, jnp.float32)
    if dim == 2:
        c, s = jnp.cos(angles[:, 0]), jnp.sin(angles[:, 0])
        return jnp.stack([jnp.stack([c, -s], -1), jnp.stack([s, c], -1)], -2)
    if dim == 3:
        def rot(axis, a):
            c, s = jnp.cos(a), jnp.sin(a)
            o, z = jnp.ones_like(c), jnp.zeros_like(c)
            if axis == 0:
                rows = [[o, z, z], [z, c, -s], [z, s, c]]
            elif axis == 1:
                rows = [[c, z, s], [z, o, z], [-s, z, c]]
            else:
                rows = [[c, -s, z], [s, c, z], [z, z, o]]
            return jnp.stack([jnp.stack(r, -1) for r in rows], -2)
        return rot(0, angles[:, 0]) @ rot(1, angles[:, 1]) @ rot(2, angles[:, 2])
    raise ValueError(f'dim must be 2 or 3, got {dim}')


def affine_matrix_classic(prm, dim):
    """Classic parameters (*T, *R, *Z, *S) (trailing groups optional) -> T @ R @ Z @ S.

    Convention: 3D rotation = Rx @ Ry @ Rz; shears fill the strict upper triangle.
    """
    prm = jnp.asarray(prm, jnp.float32)
    B, n = prm.shape
    nr = dim * (dim - 1) // 2
    counts = {dim: 1, dim + nr: 2, dim + nr + dim: 3, dim + nr + dim + nr: 4}
    if n not in counts:
        raise ValueError(f'cannot interpret {n} classic parameters for dim={dim}')
    ng = counts[n]
    t = prm[:, :dim]
    r = prm[:, dim:dim + nr] if ng >= 2 else jnp.zeros((B, nr), jnp.float32)
    z = prm[:, dim + nr:dim + nr + dim] if ng >= 3 else jnp.ones((B, dim), jnp.float32)
    s = prm[:, dim + nr + dim:] if ng >= 4 else jnp.zeros((B, nr), jnp.float32)

    R = _rotation_matrix(r, dim)
    Z = jnp.eye(dim, dtype=jnp.float32)[None] * z[:, None, :]
    S = jnp.tile(jnp.eye(dim, dtype=jnp.float32)[None], (B, 1, 1))
    if dim == 2:
        S = S.at[:, 0, 1].set(s[:, 0])
    else:
        S = S.at[:, 0, 1].set(s[:, 0]).at[:, 0, 2].set(s[:, 1]).at[:, 1, 2].set(s[:, 2])

    lin = R @ Z @ S
    top = jnp.concatenate([lin, t[:, :, None]], axis=-1)            # (B, dim, dim+1)
    bot = jnp.zeros((B, 1, dim + 1), jnp.float32).at[:, 0, dim].set(1.0)
    return jnp.concatenate([top, bot], axis=1)                      # (B, dim+1, dim+1)


def affine_classic(prm, dim, basis='CSO', logzooms=False):
    """JAX port of AffineClassic.forward: (B, nb_prm) -> (B, dim+1, dim+1)."""
    prm = jnp.asarray(prm, jnp.float32)
    nb_prm = prm.shape[-1]
    eps = float(jnp.finfo(jnp.float32).eps)
    nr = dim * (dim - 1) // 2

    def checkdim(expected):
        if nb_prm != expected:
            raise ValueError(f'Expected {expected} parameters for group '
                             f'{basis}({dim}) but got {nb_prm}.')

    if basis == 'T':
        checkdim(dim)
    elif basis == 'SE':
        checkdim(dim + nr)
    elif basis == 'D':
        checkdim(dim + 1)
        t_, zoom = prm[..., :dim], prm[..., -1:]
        zoom = jnp.broadcast_to(zoom, (*zoom.shape[:-1], dim))
        zoom = jnp.exp(zoom) if logzooms else jnp.maximum(zoom, eps)
        # zero rotations inserted so the [T, R, Z] layout applies (rotation 0 == I)
        prm = jnp.concatenate(
            [t_, jnp.zeros((*prm.shape[:-1], nr), jnp.float32), zoom], axis=-1)
    elif basis == 'CSO':
        checkdim(dim + nr + 1)
        rigid, zoom = prm[..., :-1], prm[..., -1:]
        zoom = jnp.broadcast_to(zoom, (*zoom.shape[:-1], dim))
        zoom = jnp.exp(zoom) if logzooms else jnp.maximum(zoom, eps)
        prm = jnp.concatenate([rigid, zoom], axis=-1)
    elif basis == 'Aff+':
        checkdim(dim * (dim + 1))
        rigid = prm[..., :dim + nr]
        zoom = prm[..., dim + nr:2 * dim + nr]
        zoom = jnp.exp(zoom) if logzooms else jnp.maximum(zoom, eps)
        strides = prm[..., 2 * dim + nr:]
        prm = jnp.concatenate([rigid, zoom, strides], axis=-1)
    else:
        # TODO(synk): 'SO' and 'GL+' (groups without a translation block) not ported.
        raise NotImplementedError(f'basis {basis!r} not ported')
    return affine_matrix_classic(prm, dim)


# ----------------------------------------------------------------------------
# AffineGrid hot path: Pallas kernel.
# ----------------------------------------------------------------------------
def _affine_grid_kernel(base_ref, coef_ref, out_ref, *, r_axis):
    """out[0, i, l] = lane_base[l] + lane_coef[l] * (row_offset + i).

    base_ref, coef_ref : (1, 1, tile_c) f32 — per-batch lane vectors holding
                         trans[d] + sum_{k>=1} lin[d,k]*coord_k (+ in-group row offset)
                         and (group_size * lin[d,0]) for the interleaved lane index.
    out_ref            : (1, tile_r, tile_c) f32 — lane-dense channel-last tile.
    """
    tile_r, tile_c = out_ref.shape[1], out_ref.shape[2]
    row0 = pl.program_id(r_axis) * tile_r                     # row-tile offset
    row = (row0 + lax.broadcasted_iota(jnp.int32, (tile_r, tile_c), 0)).astype(jnp.float32)
    out_ref[0] = base_ref[0] + coef_ref[0] * row              # 1 FMA/element, lane-dense store


def affine_grid(affine, shape, shift=False, *, block_bytes=8 * 1024 * 1024):
    """Pallas equivalent of AffineGrid(shape, shift).forward(affine).

    affine : (B, nd[+1], nd+1), shape : nd ints  ->  grid (B, *shape, nd) f32.
    """
    affine = jnp.asarray(affine, jnp.float32)
    nd = affine.shape[-1] - 1
    B = affine.shape[0]
    shape = tuple(int(s) for s in shape)
    assert len(shape) == nd and 1 <= nd <= 3
    assert shape[0] < (1 << 24)  # row index built in int32 then cast to f32: exact below 2^24

    # ---- glue: optional centering shift  A' = S^-1 A S ----
    lin = affine[:, :nd, :nd]                            # (B, nd, nd)
    trans = affine[:, :nd, nd]                           # (B, nd)
    if shift:
        half = jnp.asarray(shape, jnp.float32) / 2.0
        trans = trans - jnp.einsum('bij,j->bi', lin, half) + half

    # ---- layout: rows = shape[0], lanes = trailing spatial dims interleaved with d ----
    R = shape[0]
    trailing = shape[1:]
    P = 1
    for s in trailing:
        P *= s
    C = P * nd                                           # lane width of the flat slab

    # Per-batch lane vectors (tiny: O(B*C) vs O(B*R*C) output). Precomputing them here
    # avoids in-kernel integer div/mod and per-tile select logic.
    if trailing:
        mesh = jnp.stack(
            jnp.meshgrid(*[jnp.arange(s, dtype=jnp.float32) for s in trailing],
                         indexing='ij'),
            axis=-1).reshape(P, nd - 1)                  # (P, nd-1) trailing coords
        base = trans[:, None, :] + jnp.einsum('pk,bdk->bpd', mesh, lin[:, :, 1:])
    else:
        base = trans[:, None, :]                         # nd == 1
    lane_base = base.reshape(B, 1, C)                                        # (B,1,C)
    lane_coef = jnp.broadcast_to(lin[:, None, :, 0], (B, P, nd)).reshape(B, 1, C)

    # ---- lane packing: make the flat lane width a multiple of 128 (unmasked stores) ----
    # Pack g consecutive rows into the lane axis: slab (B, R/g, g*C) with
    #   base_packed[j*C + l] = base[l] + j*coef[l]   and   coef_packed[j*C + l] = g*coef[l]
    # so the kernel body is unchanged and the reshape back to (B, *shape, nd) stays free.
    g = 1
    if C % 128 != 0:
        g0 = 128 // math.gcd(C, 128)
        m = g0
        while m <= R and m * C <= 16384:                 # keep lane-vector precompute tiny
            if R % m == 0:
                g = m
                break
            m += g0
    if g > 1:
        j = jnp.arange(g, dtype=jnp.float32)[None, :, None]                  # (1,g,1)
        b0 = lane_base[:, 0, :][:, None, :]                                  # (B,1,C)
        c0 = lane_coef[:, 0, :][:, None, :]                                  # (B,1,C)
        lane_base = (b0 + j * c0).reshape(B, 1, g * C)
        lane_coef = jnp.broadcast_to(c0 * float(g), (B, g, C)).reshape(B, 1, g * C)
    Rg, Cg = R // g, g * C

    # ---- VMEM / block budget (generation-aware clamp) ----
    try:
        info = pltpu.get_tpu_info()
        vmem_cap = int(getattr(info, 'vmem_capacity_bytes', 64 * 1024 * 1024))
    except Exception:  # pragma: no cover - off-TPU tracing fallback
        vmem_cap = 64 * 1024 * 1024
    # ~40 MiB budget on v7x (64 MiB VMEM); same cap is comfortable on v5e/v6e (128 MiB).
    budget = min((vmem_cap * 5) // 8, 40 * 1024 * 1024)
    block_bytes = max(32 * 1024, min(int(block_bytes), budget // 2))

    # ---- tile selection: <= block_bytes per output block (double-buffered by Pallas) ----
    max_elems = max(8 * 128, block_bytes // 4)
    if Rg * Cg <= max_elems:
        tile_r, tile_c = Rg, Cg                          # whole per-batch slab
    elif Cg <= max_elems // 8:
        tile_c = Cg                                      # full lane width (lane-dense)
        tile_r = min(Rg, max(8, (max_elems // Cg) // 8 * 8))
    else:                                                # very wide rows: deep tiles, tile lanes
        tile_r = min(Rg, 128)
        if tile_r > 8:
            tile_r = max(8, tile_r // 8 * 8)
        tile_c = min(Cg, max(128, (max_elems // tile_r) // 128 * 128))
        if tile_r * tile_c > max_elems and tile_r > 8:
            tile_r = max(8, (max_elems // tile_c) // 8 * 8)
    n_rt = pl.cdiv(Rg, tile_r)
    n_ct = pl.cdiv(Cg, tile_c)

    # ---- megacore (v7x): guarantee an even, >1 parallel extent when possible ----
    if n_rt == 1 and (B * n_ct) % 2 == 1 and Rg >= 16:
        tile_r = pl.cdiv(pl.cdiv(Rg, 2), 8) * 8
        n_rt = pl.cdiv(Rg, tile_r)

    # ---- grid ordering: lead with an even (>1) parallel axis; keep output index unique ----
    if B > 1 and B % 2 == 0:
        grid = (B, n_ct, n_rt); r_axis = 2               # r innermost: lane vecs fetched once
        in_map = lambda b, c, r: (b, 0, c)
        out_map = lambda b, c, r: (b, r, c)
    elif n_rt > 1:
        grid = (n_rt, B, n_ct); r_axis = 0
        in_map = lambda r, b, c: (b, 0, c)
        out_map = lambda r, b, c: (b, r, c)
    elif n_ct > 1:
        grid = (n_ct, B, n_rt); r_axis = 2
        in_map = lambda c, b, r: (b, 0, c)
        out_map = lambda c, b, r: (b, r, c)
    else:
        grid = (B, n_ct, n_rt); r_axis = 2
        in_map = lambda b, c, r: (b, 0, c)
        out_map = lambda b, c, r: (b, r, c)

    # ---- VMEM limit derived from the actual tile: 2x double-buffered output + inputs + slack
    tile_bytes = tile_r * tile_c * 4
    vmem_limit = 2 * tile_bytes + 2 * 2 * tile_c * 4 + (1 << 20)
    vmem_limit = max(4 * 1024 * 1024, min(vmem_limit, vmem_cap))

    kernel = functools.partial(_affine_grid_kernel, r_axis=r_axis)

    out_flat = pl.pallas_call(
        kernel,
        grid=grid,
        in_specs=[
            pl.BlockSpec((1, 1, tile_c), in_map),
            pl.BlockSpec((1, 1, tile_c), in_map),
        ],
        out_specs=pl.BlockSpec((1, tile_r, tile_c), out_map),
        out_shape=jax.ShapeDtypeStruct((B, Rg, Cg), jnp.float32),
        compiler_params=pltpu.CompilerParams(
            dimension_semantics=("parallel", "parallel", "parallel"),
            vmem_limit_bytes=int(vmem_limit)),
        cost_estimate=pl.CostEstimate(
            flops=2 * B * Rg * Cg,
            transcendentals=0,
            bytes_accessed=4 * (B * Rg * Cg + 2 * B * Cg)),
    )(lane_base, lane_coef)

    # (B, Rg, Cg) is bit-identical to (B, R, C) == (B, *shape, nd): free reshape, no transpose.
    return out_flat.reshape((B,) + shape + (nd,))


# ----------------------------------------------------------------------------
# Pure-JAX reference for correctness checking.
# ----------------------------------------------------------------------------
def _reference_affine_grid(affine, shape, shift=False):
    affine = jnp.asarray(affine, jnp.float32)
    nd = affine.shape[-1] - 1
    lin = affine[:, :nd, :nd]
    trans = affine[:, :nd, nd]
    if shift:
        half = jnp.asarray(shape, jnp.float32) / 2.0
        trans = trans - jnp.einsum('bij,j->bi', lin, half) + half
    coords = jnp.stack(
        jnp.meshgrid(*[jnp.arange(n, dtype=jnp.float32) for n in shape],
                     indexing='ij'),
        axis=-1)                                          # (*shape, nd)
    out = jnp.einsum('...k,bdk->b...d', coords, lin)
    out = out + trans.reshape((trans.shape[0],) + (1,) * nd + (nd,))
    return out


if __name__ == "__main__":
    key = jax.random.PRNGKey(0)
    B = 2

    # ---------------- 2D, CSO basis (tx, ty, theta, log-zoom) ----------------
    k1, k2, k3, key = jax.random.split(key, 4)
    prm2 = jnp.concatenate([
        2.0 * jax.random.normal(k1, (B, 2), dtype=jnp.float32),
        0.2 * jax.random.normal(k2, (B, 1), dtype=jnp.float32),
        0.1 * jax.random.normal(k3, (B, 1), dtype=jnp.float32),
    ], axis=-1)
    aff2 = affine_classic(prm2, dim=2, basis='CSO', logzooms=True)
    assert aff2.shape == (B, 3, 3)

    # C = 16*2 = 32 < 128 -> lane-packing path (g=4, packed lane width 128) exercised.
    shape2 = (16, 16)
    for shift in (False, True):
        out = jax.block_until_ready(affine_grid(aff2, shape2, shift=shift))
        assert out.shape == (B, *shape2, 2), out.shape
        ref = _reference_affine_grid(aff2, shape2, shift=shift)
        assert jnp.allclose(out, ref, atol=1e-3, rtol=1e-4)

    # ---------------- 3D, CSO basis (tx, ty, tz, rx, ry, rz, log-zoom) ----------------
    k1, k2, k3, key = jax.random.split(key, 4)
    prm3 = jnp.concatenate([
        2.0 * jax.random.normal(k1, (B, 3), dtype=jnp.float32),
        0.2 * jax.random.normal(k2, (B, 3), dtype=jnp.float32),
        0.1 * jax.random.normal(k3, (B, 1), dtype=jnp.float32),
    ], axis=-1)
    aff3 = affine_classic(prm3, dim=3, basis='CSO', logzooms=True)
    assert aff3.shape == (B, 4, 4)

    shape3 = (24, 16, 16)
    for shift in (False, True):
        out = jax.block_until_ready(affine_grid(aff3, shape3, shift=shift))
        assert out.shape == (B, *shape3, 3), out.shape
        ref = _reference_affine_grid(aff3, shape3, shift=shift)
        assert jnp.allclose(out, ref, atol=1e-3, rtol=1e-4)

    # Small block budget -> multiple (and ragged) row tiles exercised.
    out = jax.block_until_ready(affine_grid(aff3, shape3, shift=True,
                                            block_bytes=64 * 1024))
    ref = _reference_affine_grid(aff3, shape3, shift=True)
    assert jnp.allclose(out, ref, atol=1e-3, rtol=1e-4)

    # Wide rows + small budget -> multiple (and ragged) lane tiles exercised.
    shape3b = (8, 32, 32)
    out = jax.block_until_ready(affine_grid(aff3, shape3b, shift=False,
                                            block_bytes=64 * 1024))
    ref = _reference_affine_grid(aff3, shape3b, shift=False)
    assert jnp.allclose(out, ref, atol=1e-3, rtol=1e-4)

    # B == 1, single-slab case -> megacore forced row split + reordered grid exercised.
    aff3_single = aff3[:1]
    shape3c = (32, 16, 16)
    out = jax.block_until_ready(affine_grid(aff3_single, shape3c, shift=True))
    ref = _reference_affine_grid(aff3_single, shape3c, shift=True)
    assert out.shape == (1, *shape3c, 3), out.shape
    assert jnp.allclose(out, ref, atol=1e-3, rtol=1e-4)

    print("KERNEL_OK")
</pallas_src>

<mosaic_0001>
module attributes {stable_mosaic.version = 11 : i64} {
  func.func @_affine_grid_kernel(%arg0: i32, %arg1: i32, %arg2: i32, %arg3: memref<1x1x128xf32, #tpu.memory_space<vmem>>, %arg4: memref<1x1x128xf32, #tpu.memory_space<vmem>>, %arg5: memref<1x4x128xf32, #tpu.memory_space<vmem>>) attributes {dimension_semantics = [#tpu.dimension_semantics<parallel>, #tpu.dimension_semantics<parallel>, #tpu.dimension_semantics<parallel>], iteration_bounds = array<i64: 2, 1, 1>, scalar_prefetch = 0 : i64, scratch_operands = 0 : i64, tpu.core_type = #tpu.core_type<tc>, window_params = [{transform_indices = @transform_0, window_bounds = array<i64: 1, 1, 128>}, {transform_indices = @transform_1, window_bounds = array<i64: 1, 1, 128>}, {transform_indices = @transform_2, window_bounds = array<i64: 1, 4, 128>}]} {
    %c4_i32 = arith.constant 4 : i32
    %0 = arith.muli %arg2, %c4_i32 : i32
    %1 = tpu.iota {dimensions = array<i32: 0>} : vector<4x128xi32>
    %2 = vector.broadcast %0 : i32 to vector<4x128xi32>
    %3 = arith.addi %2, %1 : vector<4x128xi32>
    %4 = arith.sitofp %3 : vector<4x128xi32> to vector<4x128xf32>
    %c0 = arith.constant 0 : index
    %c0_0 = arith.constant 0 : index
    %c0_1 = arith.constant 0 : index
    %5 = vector.load %arg3[%c0, %c0_0, %c0_1] : memref<1x1x128xf32, #tpu.memory_space<vmem>>, vector<1x1x128xf32>
    %6 = vector.shape_cast %5 : vector<1x1x128xf32> to vector<1x128xf32>
    %c0_2 = arith.constant 0 : index
    %c0_3 = arith.constant 0 : index
    %c0_4 = arith.constant 0 : index
    %7 = vector.load %arg4[%c0_2, %c0_3, %c0_4] : memref<1x1x128xf32, #tpu.memory_space<vmem>>, vector<1x1x128xf32>
    %8 = vector.shape_cast %7 : vector<1x1x128xf32> to vector<1x128xf32>
    %9 = vector.broadcast %8 : vector<1x128xf32> to vector<4x128xf32>
    %10 = arith.mulf %9, %4 : vector<4x128xf32>
    %11 = vector.broadcast %6 : vector<1x128xf32> to vector<4x128xf32>
    %12 = arith.addf %11, %10 : vector<4x128xf32>
    %c0_5 = arith.constant 0 : index
    %c0_6 = arith.constant 0 : index
    %c0_7 = arith.constant 0 : index
    %13 = vector.load %arg5[%c0_5, %c0_6, %c0_7] : memref<1x4x128xf32, #tpu.memory_space<vmem>>, vector<1x4x128xf32>
    %14 = vector.shape_cast %13 : vector<1x4x128xf32> to vector<4x128xf32>
    %15 = vector.shape_cast %12 : vector<4x128xf32> to vector<1x4x128xf32>
    tpu.vector_store %arg5[%c0_5, %c0_6, %c0_7], %15 {strides = array<i32>} : memref<1x4x128xf32, #tpu.memory_space<vmem>>, vector<1x4x128xf32>,
    return
  }
  func.func @transform_0(%arg0: i32, %arg1: i32, %arg2: i32) -> (i32, i32, i32) {
    %c0_i32 = arith.constant 0 : i32
    %c0_i32_0 = arith.constant 0 : i32
    return %arg0, %c0_i32, %arg1 : i32, i32, i32
  }
  func.func @transform_1(%arg0: i32, %arg1: i32, %arg2: i32) -> (i32, i32, i32) {
    %c0_i32 = arith.constant 0 : i32
    %c0_i32_0 = arith.constant 0 : i32
    return %arg0, %c0_i32, %arg1 : i32, i32, i32
  }
  func.func @transform_2(%arg0: i32, %arg1: i32, %arg2: i32) -> (i32, i32, i32) {
    %c0_i32 = arith.constant 0 : i32
    return %arg0, %arg2, %arg1 : i32, i32, i32
  }
}

</mosaic_0001>

<llo_original>
// kernel: tpu_custom_call.1
$region0: #{tpu_custom_call.1}
  #allocation0 [shape = 'u32[]', space=smem, size = 0x4, offset = 0x4, fixed_abs, tag = 'smem constant byte address 0x4 - core index']
  #allocation1 [shape = 'u32[144,128]{1,0:T(1,128)}', space=vmem, size = 0x12000, scoped, tag = 'internal scratch']
  %s0 = inlined_call_operand.hbm [shape: f32[2,1,128], index: 0, kind: input, shape index: {}]
  %s1 = inlined_call_operand.vmem [shape: f32[2,1,128], index: 1, kind: input, shape index: {}]
  %s2 = inlined_call_operand.hbm [shape: f32[2,4,128], index: 2, kind: output, shape index: {}]
  %s3 = sld [smem:[#allocation0]]
  $region45: #{tpu_custom_call.1} parent=0
    _
  %s5 = ssub.s32 1, %s3
  %s6 = scalar_select 0, %s5, %s3
  $region1: #{tpu_custom_call.1} parent=0
    #allocation2 [shape = 'u8[1024]{0}', space=vmem, size = 0x400, scoped, tag = 'input window, operand 0']
    #allocation3 [shape = 's32[2]{0}', space=sflag, size = 0x8, scoped, tag = 'scoped memory for tpu_custom_call.1']
    #allocation4 [shape = 's32[2]{0}', space=sflag, size = 0x8, scoped, tag = 'scoped memory for tpu_custom_call.1']
    #allocation5 [shape = 'u8[4096]{0}', space=vmem, size = 0x1000, scoped, tag = 'output window, operand 0']
    %7 = vsyncpa [#allocation3], 0
    %s8 = scalar_lea.sflag [#allocation3], 1
    %9 = vsyncpa %s8, 0
    %10 = vsyncpa [#allocation4], 0
    %s11 = scalar_lea.sflag [#allocation4], 1
    %12 = vsyncpa %s11, 0
    loop: start=0, step=1, limit=4
    $region2: #{tpu_custom_call.1} parent=1 // loop_pre_header
      _
    $region3: #{tpu_custom_call.1} parent=1 // loop_header
      %s14 = sphi 0, %s18
      %p15 = scmp.ge.s32.totalorder %s14, 4
      %s21 = sphi 0, %s40
      %s22 = sphi 0, %s36
      %s23 = sphi 0, %s32
      %s24 = sphi 0, %s21
      %s25 = sphi 0, %s22
      %s26 = sphi 0, %s23
      %s27 = sphi 0, %s24
      %s28 = sphi 0, %s25
      %s29 = sphi 0, %s26
      %s45 = sphi 0, %s47
      %s48 = sphi 0, %s45
      %s49 = sphi 0, %s48
      %s65 = sphi 0, %s49
      %s73 = sphi 0, %s75
      %s76 = sphi 0, %s73
      %s77 = sphi 0, %s76
      %s93 = sphi 0, %s77
      %s103 = sphi 0, %s105
      %s106 = sphi 0, %s103
      %s107 = sphi 0, %s106
      %s123 = sphi 0, %s107
    $region4: #{tpu_custom_call.1} parent=1 // loop_header_branch
      %17 = sbr.rel (%p15) target = $region8
    $region5: #{tpu_custom_call.1} parent=1 // loop_body
      %s19 = ssub.s32 %s14, 1
      %s20 = ssub.s32 %s14, 2
      %s30 = sadd.s32 1, %s23
      %p31 = scmp.ge.s32.totalorder %s30, 1
      %s32 = scalar_select %p31, 0, %s30
      %s33 = sadd.s32 1, %s22
      %s34 = scalar_select %p31, %s33, %s22
      %p35 = scmp.ge.s32.totalorder %s34, 1
      %s36 = scalar_select %p35, 0, %s34
      %s37 = sadd.s32 1, %s21
      %s38 = scalar_select %p35, %s37, %s21
      %p39 = scmp.ge.s32.totalorder %s38, 2
      %s40 = scalar_select %p39, 0, %s38
      %s41 = ssub.s32 %s21, %s40
      %s42 = ssub.s32 %s22, %s36
      %s43 = sor.u32 %s41, %s42
      %p44 = scmp.eq.s32.totalorder %s43, 0
      %s46 = sadd.s32 %s45, 1
      %s47 = scalar_select %p44, %s45, %s46
      %p50 = pneg %p44
      %p51 = scmp.eq.s32.totalorder %s14, 1
      %p52 = por %p50, %p51
      %p53 = scmp.ne.s32.totalorder %s45, %s48
      %p54 = scmp.eq.s32.totalorder %s14, 0
      %p55 = por %p53, %p54
      %p56 = scmp.ne.s32.totalorder %s45, %s48
      %p57 = scmp.eq.s32.totalorder %s19, 1
      %p58 = por %p56, %p57
      %p59 = scmp.ne.s32.totalorder %s48, %s49
      %p60 = scmp.eq.s32.totalorder %s19, 0
      %p61 = por %p59, %p60
      %p62 = scmp.ne.s32.totalorder %s48, %s49
      %p63 = scmp.eq.s32.totalorder %s20, 1
      %p64 = por %p62, %p63
      %p66 = scmp.ne.s32.totalorder %s49, %s65
      %p67 = scmp.eq.s32.totalorder %s20, 0
      %p68 = por %p66, %p67
      %s69 = ssub.s32 %s21, %s40
      %s70 = ssub.s32 %s22, %s36
      %s71 = sor.u32 %s69, %s70
      %p72 = scmp.eq.s32.totalorder %s71, 0
      %s74 = sadd.s32 %s73, 1
      %s75 = scalar_select %p72, %s73, %s74
      %p78 = pneg %p72
      %p79 = scmp.eq.s32.totalorder %s14, 1
      %p80 = por %p78, %p79
      %p81 = scmp.ne.s32.totalorder %s73, %s76
      %p82 = scmp.eq.s32.totalorder %s14, 0
      %p83 = por %p81, %p82
      %p84 = scmp.ne.s32.totalorder %s73, %s76
      %p85 = scmp.eq.s32.totalorder %s19, 1
      %p86 = por %p84, %p85
      %p87 = scmp.ne.s32.totalorder %s76, %s77
      %p88 = scmp.eq.s32.totalorder %s19, 0
      %p89 = por %p87, %p88
      %p90 = scmp.ne.s32.totalorder %s76, %s77
      %p91 = scmp.eq.s32.totalorder %s20, 1
      %p92 = por %p90, %p91
      %p94 = scmp.ne.s32.totalorder %s77, %s93
      %p95 = scmp.eq.s32.totalorder %s20, 0
      %p96 = por %p94, %p95
      %s97 = ssub.s32 %s21, %s40
      %s98 = ssub.s32 %s23, %s32
      %s99 = sor.u32 %s97, %s98
      %s100 = ssub.s32 %s22, %s36
      %s101 = sor.u32 %s99, %s100
      %p102 = scmp.eq.s32.totalorder %s101, 0
      %s104 = sadd.s32 %s103, 1
      %s105 = scalar_select %p102, %s103, %s104
      %p108 = pneg %p102
      %p109 = scmp.eq.s32.totalorder %s14, 1
      %p110 = por %p108, %p109
      %p111 = scmp.ne.s32.totalorder %s103, %s106
      %p112 = scmp.eq.s32.totalorder %s14, 0
      %p113 = por %p111, %p112
      %p114 = scmp.ne.s32.totalorder %s103, %s106
      %p115 = scmp.eq.s32.totalorder %s19, 1
      %p116 = por %p114, %p115
      %p117 = scmp.ne.s32.totalorder %s106, %s107
      %p118 = scmp.eq.s32.totalorder %s19, 0
      %p119 = por %p117, %p118
      %p120 = scmp.ne.s32.totalorder %s106, %s107
      %p121 = scmp.eq.s32.totalorder %s20, 1
      %p122 = por %p120, %p121
      %p124 = scmp.ne.s32.totalorder %s107, %s123
      %p125 = scmp.eq.s32.totalorder %s20, 0
      %p126 = por %p124, %p125
      %p127 = scmp.le.s32.totalorder 1, %s14
      %p128 = scmp.lt.s32.totalorder %s14, 3
      %p129 = pnand %p127, %p128
      %p130 = pneg %p129
      // Predicated region
      $region9: #{tpu_custom_call.1} parent=5 // pred_check
        _
      $region10: #{tpu_custom_call.1} parent=5 // pred_check_branch
        %132 = sbr.rel (%p129) target = $region12
      $region11: #{tpu_custom_call.1} parent=5 // pred_region
        %s133 = ssub.s32 %s14, 1
      $region12: #{tpu_custom_call.1} parent=5 // pred_fallthru
        _
      %p134 = scmp.lt.s32.totalorder %s14, 2
      // Predicated region
      $region13: #{tpu_custom_call.1} parent=5 // pred_check
        %p135 = pneg %p134
      $region14: #{tpu_custom_call.1} parent=5 // pred_check_branch
        %137 = sbr.rel (%p135) target = $region16
      $region15: #{tpu_custom_call.1} parent=5 // pred_region
        // Predicated region
        $region17: #{tpu_custom_call.1} parent=15 // pred_check
          %p138 = pneg %p55
        $region18: #{tpu_custom_call.1} parent=15 // pred_check_branch
          %140 = sbr.rel (%p138) target = $region20
        $region19: #{tpu_custom_call.1} parent=15 // pred_region
          %s141 = sand.u32 %s45, 1
          %s142 = scalar_lea.sflag [#allocation3], %s141
          %s143 = sand.u32 %s45, 1
          %s144 = scalar_lea.vmem [#allocation2], %s143
          %s146 = ssub.s32 16, 16
          %147 = vsyncadd %s142, %s146
          %s148 = sadd.s32 %s22, %s21
          %s149 = smul.addr %s148, 16
          %s150 = scalar_lea.hbm %s0, %s149
          %s152 = sshll.u32 %s144, 4
          %s153 = int_to_ptr.vmem [resolvable:$true] %s152
          %155 = dma.hbm_to_vmem [thread:$0]  %s150, 16, %s153, %s142
        $region20: #{tpu_custom_call.1} parent=15 // pred_fallthru
          _
        // Predicated region
        $region21: #{tpu_custom_call.1} parent=15 // pred_check
          %p156 = pneg %p83
        $region22: #{tpu_custom_call.1} parent=15 // pred_check_branch
          %158 = sbr.rel (%p156) target = $region24
        $region23: #{tpu_custom_call.1} parent=15 // pred_region
          %p159 = scmp.lt.s32.totalorder %s21, 1
          %s160 = scalar_select %p159, %s21, 1
          %p161 = scmp.lt.s32.totalorder %s22, 0
          %s162 = scalar_select %p161, %s22, 0
          %s163 = sadd.s32 %s162, %s160
          %s164 = scalar_lea.vmem %s1, %s163
        $region24: #{tpu_custom_call.1} parent=15 // pred_fallthru
          _
      $region16: #{tpu_custom_call.1} parent=5 // pred_fallthru
        _
      %p165 = scmp.le.s32.totalorder 1, %s14
      %p166 = scmp.lt.s32.totalorder %s14, 3
      %p167 = pnand %p165, %p166
      %p168 = pneg %p167
      // Predicated region
      $region25: #{tpu_custom_call.1} parent=5 // pred_check
        _
      $region26: #{tpu_custom_call.1} parent=5 // pred_check_branch
        %170 = sbr.rel (%p167) target = $region28
      $region27: #{tpu_custom_call.1} parent=5 // pred_region
        %s171 = ssub.s32 %s14, 1
        %s172 = sand.u32 %s48, 1
        %s173 = scalar_lea.sflag [#allocation3], %s172
        %s174 = sand.u32 %s48, 1
        %s175 = scalar_lea.vmem [#allocation2], %s174
        // Predicated region
        $region29: #{tpu_custom_call.1} parent=27 // pred_check
          %p176 = pneg %p61
        $region30: #{tpu_custom_call.1} parent=27 // pred_check_branch
          %178 = sbr.rel (%p176) target = $region32
        $region31: #{tpu_custom_call.1} parent=27 // pred_region
          %179 = dma.done %s173, 16
        $region32: #{tpu_custom_call.1} parent=27 // pred_fallthru
          _
        %s180 = sand.u32 %s48, 1
        %s181 = scalar_lea.sflag [#allocation3], %s180
        %s182 = sand.u32 %s48, 1
        %s183 = scalar_lea.vmem [#allocation2], %s182
        %p184 = pneg %p61
        %p185 = pneg %p58
        %p186 = scmp.lt.s32.totalorder %s24, 1
        %s187 = scalar_select %p186, %s24, 1
        %p188 = scmp.lt.s32.totalorder %s25, 0
        %s189 = scalar_select %p188, %s25, 0
        %s190 = sadd.s32 %s189, %s187
        %s191 = scalar_lea.vmem %s1, %s190
        %p192 = pneg %p89
        %p193 = pneg %p86
        %p194 = pneg %p119
        %p195 = pneg %p116
        %s196 = sand.u32 %s106, 1
        %s197 = scalar_lea.sflag [#allocation4], %s196
        %s198 = sand.u32 %s106, 1
        %s199 = smul.addr %s198, 4
        %s200 = scalar_lea.vmem [#allocation5], %s199
        %p201 = scmp.lt.s32.totalorder %s24, 1
        %s202 = scalar_select %p201, %s24, 1
        %p203 = scmp.lt.s32.totalorder %s25, 0
        %s204 = scalar_select %p203, %s25, 0
        %s205 = sadd.s32 %s204, %s202
        %s206 = scalar_lea.vmem %s1, %s205
        %s207 = smul.u32 %s26, 4
        %v208 = vlaneseq
        %v209 = vshrl.u32 %v208, 7
        %v210 = vstv %s207
        %v211 = vadd.s32 %v210, %v209
        %v212 = vcvt.s32.f32 %v211
        %v213 = vld [vmem:[%s175] sm:$0x1]
        %v214 = vld [vmem:[%s206] sm:$0x1]
        %v216 = vlaneseq
        %v217 = vshrl.u32 %v216, 7
        %v218 = vsub.s32 0, %v217
        %v219 = vrot.slane %v214, %v218
        %v221 = vmul.f32 %v219, %v212
        %v223 = vlaneseq
        %v224 = vshrl.u32 %v223, 7
        %v225 = vsub.s32 0, %v224
        %v226 = vrot.slane %v213, %v225
        %v228 = vadd.f32 %v226, %v221
        %229 = vst [vmem:[%s200] sm:$0xf] %v228
        %s230 = sand.u32 %s106, 1
        %s231 = scalar_lea.sflag [#allocation4], %s230
        %s232 = sand.u32 %s106, 1
        %s233 = smul.addr %s232, 4
        %s234 = scalar_lea.vmem [#allocation5], %s233
        // Predicated region
        $region33: #{tpu_custom_call.1} parent=27 // pred_check
          %p235 = pneg %p116
        $region34: #{tpu_custom_call.1} parent=27 // pred_check_branch
          %237 = sbr.rel (%p235) target = $region36
        $region35: #{tpu_custom_call.1} parent=27 // pred_region
          %s239 = ssub.s32 64, 64
          %240 = vsyncadd %s231, %s239
          %s241 = sadd.s32 %s25, %s26
          %s242 = sadd.s32 %s241, %s24
          %s243 = smul.addr %s242, 64
          %s244 = scalar_lea.hbm %s2, %s243
          %s246 = sshll.u32 %s234, 4
          %s247 = int_to_ptr.vmem [resolvable:$true] %s246
          %249 = dma.vmem_to_hbm [thread:$0]  %s247, 64, %s244, %s231
        $region36: #{tpu_custom_call.1} parent=27 // pred_fallthru
          _
      $region28: #{tpu_custom_call.1} parent=5 // pred_fallthru
        _
      %p250 = scmp.le.s32.totalorder 2, %s14
      // Predicated region
      $region37: #{tpu_custom_call.1} parent=5 // pred_check
        %p251 = pneg %p250
      $region38: #{tpu_custom_call.1} parent=5 // pred_check_branch
        %253 = sbr.rel (%p251) target = $region40
      $region39: #{tpu_custom_call.1} parent=5 // pred_region
        %s254 = ssub.s32 %s14, 2
        // Predicated region
        $region41: #{tpu_custom_call.1} parent=39 // pred_check
          %p255 = pneg %p122
        $region42: #{tpu_custom_call.1} parent=39 // pred_check_branch
          %257 = sbr.rel (%p255) target = $region44
        $region43: #{tpu_custom_call.1} parent=39 // pred_region
          %s258 = sand.u32 %s107, 1
          %s259 = scalar_lea.sflag [#allocation4], %s258
          %s260 = sand.u32 %s107, 1
          %s261 = smul.addr %s260, 4
          %s262 = scalar_lea.vmem [#allocation5], %s261
          %263 = dma.done %s259, 64
        $region44: #{tpu_custom_call.1} parent=39 // pred_fallthru
          _
      $region40: #{tpu_custom_call.1} parent=5 // pred_fallthru
        _
    $region6: #{tpu_custom_call.1} parent=1 // loop_footer
      %s18 = sadd.s32 1, %s14
    $region7: #{tpu_custom_call.1} parent=1 // loop_footer_branch
      %13 = sbr.rel target = $region3
    $region8: #{tpu_custom_call.1} parent=1 // loop_exit
      _
    %264 = vsyncpa [#allocation3], 1
    %s265 = scalar_lea.sflag [#allocation3], 1
    %266 = vsyncpa %s265, 1
    %267 = vsyncpa [#allocation4], 1
    %s268 = scalar_lea.sflag [#allocation4], 1
    %269 = vsyncpa %s268, 1

</llo_original>
